<compile_context>
chip_gen: v7x
topology: tpu7x:2x2x1
jax: 0.10.0
libtpu: 0.0.40
codegen_flags: <defaults>
</compile_context>

<pallas_src>
import jax
import jax.numpy as jnp
from jax import lax
from jax.experimental import pallas as pl
from jax.experimental.pallas import tpu as pltpu


# ~12 MiB per pipelined x buffer (24 MiB double-buffered) amortizes the fixed
# ~0.35 us/step pipeline overhead to <~10% even on v7x HBM, and fits v7x's
# 64 MiB physical VMEM together with the resident weight row and output tiles.
_BYTES_PER_X_BUF = 12 << 20
# Explicit scoped-VMEM limit: above the 16/32 MiB defaults (v5e/v6e), with
# headroom left on v7x (64 MiB per TensorCore).
_VMEM_LIMIT_BYTES = 48 << 20


def _round_up(n, m):
    return ((n + m - 1) // m) * m


def _pick_rows(batch, lane_width, itemsize):
    """Rows of the (rows, lane_width) x tile per grid step, sized by HBM bytes.

    Rows are kept a multiple of 8 (sublane granularity) and snapped down to a
    multiple of 128 when large (unmasked lane-dense output stores).  For
    non-trivial batches the grid always gets >= 2 steps so the "parallel"
    batch axis can be sharded across v7x's two TensorCores.

    Note: for extremely wide feature dims (D > ~350K f32) even an 8-row tile
    exceeds the byte budget; such sizes would need a feature-reduction grid
    axis with an f32 accumulator (not needed for this module's typical sizes).
    """
    if batch <= 8:
        return batch                                   # one tiny tile; block == array
    padded_lane = _round_up(lane_width, 128)           # VMEM lane padding of the tile
    cap = max(8, (_BYTES_PER_X_BUF // (padded_lane * itemsize)) // 8 * 8)
    rows = min(cap, _round_up(pl.cdiv(batch, 2), 8))   # guarantee >= 2 grid steps
    if rows >= 128:
        rows = (rows // 128) * 128
    return rows


# ----------------------------------------------------------------------------
# Generic path: x tiled as (TB, D) rows, VPU multiply + f32 lane reduction.
# ----------------------------------------------------------------------------
def _logreg_rowsum_kernel(x_ref, w_ref, b_ref, o_ref):
    # x_ref: (TB, D) batch tile, w_ref: (1, D) resident weight row, b_ref: (1,) SMEM.
    x = x_ref[...]                                  # native dtype (bf16 stays bf16)
    w = w_ref[...].astype(x.dtype)                  # tiny (1, D) cast per step
    # VPU multiply in native dtype; accumulate the lane reduction in f32.
    z = jnp.sum(x * w, axis=-1, dtype=jnp.float32) + b_ref[0]   # (TB,)
    # Lane-dense store: one (1, TB) row instead of a masked (TB, 1) column.
    o_ref[...] = jax.nn.sigmoid(z).reshape(1, -1)


def _rowsum_forward(x, w_row, b):
    B, D = x.shape
    tb = _pick_rows(B, D, x.dtype.itemsize)
    grid = pl.cdiv(B, tb)

    out = pl.pallas_call(
        _logreg_rowsum_kernel,
        out_shape=jax.ShapeDtypeStruct((grid, tb), jnp.float32),
        grid=(grid,),
        in_specs=[
            # x: tiled over the batch axis -> pipelined HBM->VMEM DMA.
            pl.BlockSpec((tb, D), lambda i: (i, 0)),
            # weight row: same block every step (stays resident in VMEM).
            pl.BlockSpec((1, D), lambda i: (0, 0)),
            # bias: scalar in SMEM on the scalar path.
            pl.BlockSpec(memory_space=pltpu.MemorySpace.SMEM),
        ],
        out_specs=pl.BlockSpec((1, tb), lambda i: (i, 0)),
        compiler_params=pltpu.CompilerParams(
            dimension_semantics=("parallel",),     # shard batch tiles across TCs
            vmem_limit_bytes=_VMEM_LIMIT_BYTES,
        ),
    )(x, w_row, b)

    # (grid, tb) row-major == batch order; drop padded tail, return (B, 1).
    return out.reshape(-1)[:B].reshape(B, 1)


# ----------------------------------------------------------------------------
# Narrow-feature path (D < 128, 128 % D == 0, B % (128/D) == 0): pack `pack`
# samples per 128-lane row so VMEM tiles and VPU lanes are fully dense.
# ----------------------------------------------------------------------------
def _make_packed_kernel(feat, pack):
    def kernel(x_ref, w_ref, b_ref, o_ref):
        # x_ref: (TBR, 128), each row holds `pack` consecutive samples.
        # w_ref: (1, 128) = weight row tiled `pack` times.  b_ref: (1,) SMEM.
        x = x_ref[...]
        p = x * w_ref[...].astype(x.dtype)          # dense VPU multiply
        cols = []
        for j in range(pack):                        # static unroll (pack <= 16)
            seg = p[:, j * feat:(j + 1) * feat]
            cols.append(jnp.sum(seg, axis=-1, dtype=jnp.float32, keepdims=True))
        z = jnp.concatenate(cols, axis=-1) + b_ref[0]          # (TBR, pack) f32
        o_ref[...] = jax.nn.sigmoid(z)
    return kernel


def _packed_forward(x, w_row, b, pack):
    B, D = x.shape
    rows_total = (B * D) // 128
    # Contiguous row-major reshape: no data movement, just a dense 128-lane view.
    x_packed = x.reshape(rows_total, 128)
    w_tiled = jnp.tile(w_row.reshape(-1), pack).reshape(1, 128)

    tbr = _pick_rows(rows_total, 128, x.dtype.itemsize)
    grid = pl.cdiv(rows_total, tbr)

    out = pl.pallas_call(
        _make_packed_kernel(D, pack),
        out_shape=jax.ShapeDtypeStruct((grid * tbr, pack), jnp.float32),
        grid=(grid,),
        in_specs=[
            pl.BlockSpec((tbr, 128), lambda i: (i, 0)),
            pl.BlockSpec((1, 128), lambda i: (0, 0)),
            pl.BlockSpec(memory_space=pltpu.MemorySpace.SMEM),
        ],
        out_specs=pl.BlockSpec((tbr, pack), lambda i: (i, 0)),
        compiler_params=pltpu.CompilerParams(
            dimension_semantics=("parallel",),
            vmem_limit_bytes=_VMEM_LIMIT_BYTES,
        ),
    )(x_packed, w_tiled, b)

    # Row r, column j  ->  sample pack*r + j, so row-major flatten is batch order.
    return out.reshape(-1)[:B].reshape(B, 1)


@jax.jit
def logistic_regression_forward(x, w_row, b):
    """x: (B, D) float dtype (f32/bf16), w_row: (1, D) f32, b: (1,) f32 -> (B, 1) f32."""
    B, D = x.shape
    if 8 <= D < 128 and 128 % D == 0 and (B * D) % 128 == 0:
        return _packed_forward(x, w_row, b, 128 // D)
    return _rowsum_forward(x, w_row, b)


class LogisticRegressionModelPallas:
    """JAX/Pallas port of the PyTorch LogisticRegressionModel."""

    def __init__(self, input_dim, key):
        self.input_dim = input_dim
        k_w, k_b = jax.random.split(key)
        # nn.Linear default init: U(-1/sqrt(D), 1/sqrt(D)); weight kept as (1, D).
        bound = 1.0 / (input_dim ** 0.5)
        self.w = jax.random.uniform(
            k_w, (1, input_dim), dtype=jnp.float32, minval=-bound, maxval=bound
        )
        self.b = jax.random.uniform(
            k_b, (1,), dtype=jnp.float32, minval=-bound, maxval=bound
        )

    def __call__(self, x):
        # Pass x in its narrow native dtype (e.g. bf16): the HBM read is the
        # bottleneck and the kernel handles the x.float() semantics in-VMEM.
        return logistic_regression_forward(x, self.w, self.b)


if __name__ == "__main__":
    key = jax.random.PRNGKey(0)
    k_x, k_p = jax.random.split(key)

    def reference(x, model):
        z = jnp.dot(x.astype(jnp.float32), model.w.T,
                    precision=lax.Precision.HIGHEST) + model.b[0]
        return jax.nn.sigmoid(z)

    # Case 1: narrow features (D=32) -> packed-lane path, f32 (exercises packing).
    batch, input_dim = 64, 32
    x = jax.random.normal(k_x, (batch, input_dim), dtype=jnp.float32)
    model = LogisticRegressionModelPallas(input_dim, k_p)
    out = jax.block_until_ready(model(x))
    assert out.shape == (batch, 1)
    assert jnp.allclose(out, reference(x, model), atol=1e-5, rtol=1e-5)

    # Case 2: wide features (D=256) -> row-sum path, f32.
    x2 = jax.random.normal(jax.random.PRNGKey(1), (64, 256), dtype=jnp.float32)
    model2 = LogisticRegressionModelPallas(256, jax.random.PRNGKey(2))
    out2 = jax.block_until_ready(model2(x2))
    assert jnp.allclose(out2, reference(x2, model2), atol=1e-5, rtol=1e-5)

    # Case 3: bf16 input stays bf16 in HBM; bf16 multiply, f32 accumulation.
    x3 = x2.astype(jnp.bfloat16)
    out3 = jax.block_until_ready(model2(x3))
    assert jnp.allclose(out3, reference(x3, model2), atol=2e-2, rtol=2e-2)

    print("KERNEL_OK")
</pallas_src>

<mosaic_0001>
module attributes {stable_mosaic.version = 11 : i64} {
  func.func @kernel(%arg0: i32, %arg1: memref<8x128xf32, #tpu.memory_space<vmem>>, %arg2: memref<1x128xf32, #tpu.memory_space<vmem>>, %arg3: memref<1xf32, #tpu.memory_space<smem>>, %arg4: memref<8x4xf32, #tpu.memory_space<vmem>>) attributes {dimension_semantics = [#tpu.dimension_semantics<parallel>], iteration_bounds = array<i64: 2>, scalar_prefetch = 0 : i64, scratch_operands = 0 : i64, tpu.core_type = #tpu.core_type<tc>, window_params = [{transform_indices = @transform_0, window_bounds = array<i64: 8, 128>}, {pipeline_mode = #tpu.pipeline_mode<synchronous>, transform_indices = @transform_1, window_bounds = array<i64: 1, 128>}, {transform_indices = @transform_2, window_bounds = array<i64: 1>}, {transform_indices = @transform_3, window_bounds = array<i64: 8, 4>}]} {
    %c0 = arith.constant 0 : index
    %c0_0 = arith.constant 0 : index
    %0 = vector.load %arg1[%c0, %c0_0] : memref<8x128xf32, #tpu.memory_space<vmem>>, vector<8x128xf32>
    %c0_1 = arith.constant 0 : index
    %c0_2 = arith.constant 0 : index
    %1 = vector.load %arg2[%c0_1, %c0_2] : memref<1x128xf32, #tpu.memory_space<vmem>>, vector<1x128xf32>
    %2 = vector.broadcast %1 : vector<1x128xf32> to vector<8x128xf32>
    %3 = arith.mulf %0, %2 : vector<8x128xf32>
    %4 = vector.extract_strided_slice %3 {offsets = [0, 0], sizes = [8, 32], strides = [1, 1]} : vector<8x128xf32> to vector<8x32xf32>
    %cst = arith.constant dense<0.000000e+00> : vector<8xf32>
    %5 = vector.multi_reduction <add>, %4, %cst [1] : vector<8x32xf32> to vector<8xf32>
    %6 = vector.shape_cast %5 : vector<8xf32> to vector<8x1xf32>
    %7 = vector.extract_strided_slice %3 {offsets = [0, 32], sizes = [8, 32], strides = [1, 1]} : vector<8x128xf32> to vector<8x32xf32>
    %cst_3 = arith.constant dense<0.000000e+00> : vector<8xf32>
    %8 = vector.multi_reduction <add>, %7, %cst_3 [1] : vector<8x32xf32> to vector<8xf32>
    %9 = vector.shape_cast %8 : vector<8xf32> to vector<8x1xf32>
    %10 = vector.extract_strided_slice %3 {offsets = [0, 64], sizes = [8, 32], strides = [1, 1]} : vector<8x128xf32> to vector<8x32xf32>
    %cst_4 = arith.constant dense<0.000000e+00> : vector<8xf32>
    %11 = vector.multi_reduction <add>, %10, %cst_4 [1] : vector<8x32xf32> to vector<8xf32>
    %12 = vector.shape_cast %11 : vector<8xf32> to vector<8x1xf32>
    %13 = vector.extract_strided_slice %3 {offsets = [0, 96], sizes = [8, 32], strides = [1, 1]} : vector<8x128xf32> to vector<8x32xf32>
    %cst_5 = arith.constant dense<0.000000e+00> : vector<8xf32>
    %14 = vector.multi_reduction <add>, %13, %cst_5 [1] : vector<8x32xf32> to vector<8xf32>
    %15 = vector.shape_cast %14 : vector<8xf32> to vector<8x1xf32>
    %16 = tpu.concatenate %6, %9, %12, %15 in 1 : vector<8x1xf32>, vector<8x1xf32>, vector<8x1xf32>, vector<8x1xf32> -> vector<8x4xf32>
    %c0_6 = arith.constant 0 : index
    %17 = memref.load %arg3[%c0_6] : memref<1xf32, #tpu.memory_space<smem>>
    %18 = vector.broadcast %17 : f32 to vector<8x4xf32>
    %19 = arith.addf %16, %18 : vector<8x4xf32>
    %20 = arith.negf %19 : vector<8x4xf32>
    %21 = math.exp %20 : vector<8x4xf32>
    %cst_7 = arith.constant 1.000000e+00 : f32
    %22 = vector.broadcast %cst_7 : f32 to vector<8x4xf32>
    %23 = arith.addf %22, %21 : vector<8x4xf32>
    %24 = arith.divf %22, %23 : vector<8x4xf32>
    %c0_8 = arith.constant 0 : index
    %c0_9 = arith.constant 0 : index
    %25 = vector.load %arg4[%c0_8, %c0_9] : memref<8x4xf32, #tpu.memory_space<vmem>>, vector<8x4xf32>
    tpu.vector_store %arg4[%c0_8, %c0_9], %24 {strides = array<i32>} : memref<8x4xf32, #tpu.memory_space<vmem>>, vector<8x4xf32>,
    return
  }
  func.func @transform_0(%arg0: i32) -> (i32, i32) {
    %c0_i32 = arith.constant 0 : i32
    %c0_i32_0 = arith.constant 0 : i32
    return %arg0, %c0_i32 : i32, i32
  }
  func.func @transform_1(%arg0: i32) -> (i32, i32) {
    %c0_i32 = arith.constant 0 : i32
    %c0_i32_0 = arith.constant 0 : i32
    %c0_i32_1 = arith.constant 0 : i32
    return %c0_i32, %c0_i32_0 : i32, i32
  }
  func.func @transform_2(%arg0: i32) -> i32 {
    %c0_i32 = arith.constant 0 : i32
    %c0_i32_0 = arith.constant 0 : i32
    return %c0_i32 : i32
  }
  func.func @transform_3(%arg0: i32) -> (i32, i32) {
    %c0_i32 = arith.constant 0 : i32
    %c0_i32_0 = arith.constant 0 : i32
    return %arg0, %c0_i32 : i32, i32
  }
}

</mosaic_0001>

<llo_original>
// kernel: tile.7
$region0: #{tile.7}
  %s0 = inlined_call_operand.vmem [shape: f32[4,32], index: 0, kind: input, shape index: {}]
  %s1 = inlined_call_operand.vmem [shape: f32[1,128], index: 1, kind: output, shape index: {}]
  $region1: #{tile.7} parent=0
    #allocation0 [shape = 'u8[4096]{0}', space=vmem, size = 0x1000, scoped, tag = 'scoped mem for output reshape']
    #allocation1 [shape = 'u8[4096]{0}', space=vmem, size = 0x1000, scoped, tag = 'scoped mem for input reshape']
    %s3 = sshllo.u32 0, 4
    %v4 = vld [vmem:[%s0] sm:%s3]
    %5 = vst [vmem:[#allocation1] sm:%s3] %v4
    %v6 = vld [vmem:[#allocation1] sm:$0x1]
    %vm7 = vcmask 261120
    %8 = vst.msk [vmem:[#allocation0] sm:$0x1] %vm7, %v6
    %s9 = scalar_lea.vmem [#allocation1], 3
    %v10 = vld [vmem:[%s9] sm:$0x1]
    %11 = vrot.lane.b32.xlu0 %v10, 96
    %v12 = vpop.permute.xlu0 %11
    %vm13 = vcmask 1048320
    %14 = vst.msk [vmem:[#allocation0] sm:$0x1] %vm13, %v12
    %s15 = scalar_lea.vmem [#allocation1], 2
    %v16 = vld [vmem:[%s15] sm:$0x1]
    %17 = vrot.lane.b32.xlu0 %v16, 64
    %v18 = vpop.permute.xlu0 %17
    %vm19 = vcmask 785920
    %20 = vst.msk [vmem:[#allocation0] sm:$0x1] %vm19, %v18
    %s21 = scalar_lea.vmem [#allocation1], 1
    %v22 = vld [vmem:[%s21] sm:$0x1]
    %23 = vrot.lane.b32.xlu0 %v22, 32
    %v24 = vpop.permute.xlu0 %23
    %vm25 = vcmask 523520
    %26 = vst.msk [vmem:[#allocation0] sm:$0x1] %vm25, %v24
    %s28 = sshllo.u32 0, 1
    %v30 = vld [vmem:[#allocation0] sm:%s28]
    %s31 = sshllo.u32 0, 1
    %32 = vst [vmem:[%s1] sm:%s31] %v30

// kernel: tile.6
$region0: #{tile.6}
  #allocation0 [shape = 's32[1]{0}', space=sflag, size = 0x4, scoped, tag = 'scoped memory for tile.6']
  %s0 = inlined_call_operand.vmem [shape: f32[32], index: 0, kind: input, shape index: {}]
  %s1 = inlined_call_operand.vmem [shape: f32[4,32], index: 1, kind: output, shape index: {}]
  // Predicated region
  $region2: #{tile.6} parent=0 // pred_check
    _
  $region3: #{tile.6} parent=0 // pred_check_branch
    %3 = sbr.rel (0) target = $region5
  $region4: #{tile.6} parent=0 // pred_region
    _
  $region5: #{tile.6} parent=0 // pred_fallthru
    _
  %v4 = vld [vmem:[%s0] ss:$0 sm:$0xff]
  %5 = vst [vmem:[%s1] sm:$0xf] %v4

// kernel: logistic_regression_forward.1
$region0: #{logistic_regression_forward.1}
  #allocation0 [shape = 'u32[]', space=smem, size = 0x4, offset = 0x4, fixed_abs, tag = 'smem constant byte address 0x4 - core index']
  #allocation1 [shape = 'u32[144,128]{1,0:T(1,128)}', space=vmem, size = 0x12000, scoped, tag = 'internal scratch']
  #allocation2 [shape = 'f32[1]{0:T(128)S(6)}', space=smem, size = 0x200, scoped, tag = 'scoped memory for logistic_regression_forward.1']
  %s0 = inlined_call_operand.vmem [shape: f32[16,128], index: 0, kind: input, shape index: {}]
  %s1 = inlined_call_operand.vmem [shape: f32[1,128], index: 1, kind: input, shape index: {}]
  %s2 = inlined_call_operand.<no memory space> [shape: f32[1], index: 2, kind: input, shape index: {}]
  %s3 = inlined_call_operand.vmem [shape: f32[16,4], index: 3, kind: output, shape index: {}]
  %s4 = sld [smem:[#allocation0]]
  $region45: #{logistic_regression_forward.1} parent=0
    _
  %s6 = ssub.s32 1, %s4
  %s7 = scalar_select 0, %s6, %s4
  %8 = sst [smem:[#allocation2]] %s2
  loop: start=0, step=1, limit=4
  $region2: #{logistic_regression_forward.1} parent=0 // loop_pre_header
    _
  $region3: #{logistic_regression_forward.1} parent=0 // loop_header
    %s10 = sphi 0, %s14
    %p11 = scmp.ge.s32.totalorder %s10, 4
    %s20 = sphi 0, %s22
    %s23 = sphi 0, %s20
    %s24 = sphi 0, %s23
    %s40 = sphi 0, %s24
    %s44 = sphi 0, %s44
    %s46 = sphi 0, %s44
    %s47 = sphi 0, %s46
    %s61 = sphi 0, %s47
    %s65 = sphi 0, %s65
    %s67 = sphi 0, %s65
    %s68 = sphi 0, %s67
    %s82 = sphi 0, %s68
    %s88 = sphi 0, %s90
    %s91 = sphi 0, %s88
    %s92 = sphi 0, %s91
    %s108 = sphi 0, %s92
  $region4: #{logistic_regression_forward.1} parent=0 // loop_header_branch
    %13 = sbr.rel (%p11) target = $region8
  $region5: #{logistic_regression_forward.1} parent=0 // loop_body
    %s15 = ssub.s32 %s10, 1
    %s16 = ssub.s32 %s10, 2
    %s17 = sadd.s32 %s10, 1
    %s18 = ssub.s32 %s10, %s17
    %p19 = scmp.eq.s32.totalorder %s18, 0
    %s21 = sadd.s32 %s20, 1
    %s22 = scalar_select %p19, %s20, %s21
    %p25 = pneg %p19
    %p26 = scmp.eq.s32.totalorder %s10, 1
    %p27 = por %p25, %p26
    %p28 = scmp.ne.s32.totalorder %s20, %s23
    %p29 = scmp.eq.s32.totalorder %s10, 0
    %p30 = por %p28, %p29
    %p31 = scmp.ne.s32.totalorder %s20, %s23
    %p32 = scmp.eq.s32.totalorder %s15, 1
    %p33 = por %p31, %p32
    %p34 = scmp.ne.s32.totalorder %s23, %s24
    %p35 = scmp.eq.s32.totalorder %s15, 0
    %p36 = por %p34, %p35
    %p37 = scmp.ne.s32.totalorder %s23, %s24
    %p38 = scmp.eq.s32.totalorder %s16, 1
    %p39 = por %p37, %p38
    %p41 = scmp.ne.s32.totalorder %s24, %s40
    %p42 = scmp.eq.s32.totalorder %s16, 0
    %p43 = por %p41, %p42
    %s45 = sadd.s32 %s44, 1
    %p48 = scmp.eq.s32.totalorder %s10, 1
    %p49 = scmp.ne.s32.totalorder %s44, %s46
    %p50 = scmp.eq.s32.totalorder %s10, 0
    %p51 = por %p49, %p50
    %p52 = scmp.ne.s32.totalorder %s44, %s46
    %p53 = scmp.eq.s32.totalorder %s15, 1
    %p54 = por %p52, %p53
    %p55 = scmp.ne.s32.totalorder %s46, %s47
    %p56 = scmp.eq.s32.totalorder %s15, 0
    %p57 = por %p55, %p56
    %p58 = scmp.ne.s32.totalorder %s46, %s47
    %p59 = scmp.eq.s32.totalorder %s16, 1
    %p60 = por %p58, %p59
    %p62 = scmp.ne.s32.totalorder %s47, %s61
    %p63 = scmp.eq.s32.totalorder %s16, 0
    %p64 = por %p62, %p63
    %s66 = sadd.s32 %s65, 1
    %p69 = scmp.eq.s32.totalorder %s10, 1
    %p70 = scmp.ne.s32.totalorder %s65, %s67
    %p71 = scmp.eq.s32.totalorder %s10, 0
    %p72 = por %p70, %p71
    %p73 = scmp.ne.s32.totalorder %s65, %s67
    %p74 = scmp.eq.s32.totalorder %s15, 1
    %p75 = por %p73, %p74
    %p76 = scmp.ne.s32.totalorder %s67, %s68
    %p77 = scmp.eq.s32.totalorder %s15, 0
    %p78 = por %p76, %p77
    %p79 = scmp.ne.s32.totalorder %s67, %s68
    %p80 = scmp.eq.s32.totalorder %s16, 1
    %p81 = por %p79, %p80
    %p83 = scmp.ne.s32.totalorder %s68, %s82
    %p84 = scmp.eq.s32.totalorder %s16, 0
    %p85 = por %p83, %p84
    %s86 = ssub.s32 %s10, %s17
    %p87 = scmp.eq.s32.totalorder %s86, 0
    %s89 = sadd.s32 %s88, 1
    %s90 = scalar_select %p87, %s88, %s89
    %p93 = pneg %p87
    %p94 = scmp.eq.s32.totalorder %s10, 1
    %p95 = por %p93, %p94
    %p96 = scmp.ne.s32.totalorder %s88, %s91
    %p97 = scmp.eq.s32.totalorder %s10, 0
    %p98 = por %p96, %p97
    %p99 = scmp.ne.s32.totalorder %s88, %s91
    %p100 = scmp.eq.s32.totalorder %s15, 1
    %p101 = por %p99, %p100
    %p102 = scmp.ne.s32.totalorder %s91, %s92
    %p103 = scmp.eq.s32.totalorder %s15, 0
    %p104 = por %p102, %p103
    %p105 = scmp.ne.s32.totalorder %s91, %s92
    %p106 = scmp.eq.s32.totalorder %s16, 1
    %p107 = por %p105, %p106
    %p109 = scmp.ne.s32.totalorder %s92, %s108
    %p110 = scmp.eq.s32.totalorder %s16, 0
    %p111 = por %p109, %p110
    %p112 = scmp.le.s32.totalorder 1, %s10
    %p113 = scmp.lt.s32.totalorder %s10, 3
    %p114 = pnand %p112, %p113
    %p115 = pneg %p114
    // Predicated region
    $region9: #{logistic_regression_forward.1} parent=5 // pred_check
      _
    $region10: #{logistic_regression_forward.1} parent=5 // pred_check_branch
      %117 = sbr.rel (%p114) target = $region12
    $region11: #{logistic_regression_forward.1} parent=5 // pred_region
      %s118 = ssub.s32 %s10, 1
      // Predicated region
      $region13: #{logistic_regression_forward.1} parent=11 // pred_check
        %p119 = pneg %p57
      $region14: #{logistic_regression_forward.1} parent=11 // pred_check_branch
        %121 = sbr.rel (%p119) target = $region16
      $region15: #{logistic_regression_forward.1} parent=11 // pred_region
        _
      $region16: #{logistic_regression_forward.1} parent=11 // pred_fallthru
        _
      // Predicated region
      $region17: #{logistic_regression_forward.1} parent=11 // pred_check
        %p122 = pneg %p78
      $region18: #{logistic_regression_forward.1} parent=11 // pred_check_branch
        %124 = sbr.rel (%p122) target = $region20
      $region19: #{logistic_regression_forward.1} parent=11 // pred_region
        _
      $region20: #{logistic_regression_forward.1} parent=11 // pred_fallthru
        _
    $region12: #{logistic_regression_forward.1} parent=5 // pred_fallthru
      _
    %p125 = scmp.lt.s32.totalorder %s10, 2
    // Predicated region
    $region21: #{logistic_regression_forward.1} parent=5 // pred_check
      %p126 = pneg %p125
    $region22: #{logistic_regression_forward.1} parent=5 // pred_check_branch
      %128 = sbr.rel (%p126) target = $region24
    $region23: #{logistic_regression_forward.1} parent=5 // pred_region
      // Predicated region
      $region25: #{logistic_regression_forward.1} parent=23 // pred_check
        %p129 = pneg %p30
      $region26: #{logistic_regression_forward.1} parent=23 // pred_check_branch
        %131 = sbr.rel (%p129) target = $region28
      $region27: #{logistic_regression_forward.1} parent=23 // pred_region
        %p132 = scmp.lt.s32.totalorder %s10, 1
        %s133 = scalar_select %p132, %s10, 1
        %s134 = smul.addr %s133, 8
        %s135 = scalar_lea.vmem %s0, %s134
      $region28: #{logistic_regression_forward.1} parent=23 // pred_fallthru
        _
    $region24: #{logistic_regression_forward.1} parent=5 // pred_fallthru
      _
    %p136 = scmp.le.s32.totalorder 1, %s10
    %p137 = scmp.lt.s32.totalorder %s10, 3
    %p138 = pnand %p136, %p137
    %p139 = pneg %p138
    // Predicated region
    $region29: #{logistic_regression_forward.1} parent=5 // pred_check
      _
    $region30: #{logistic_regression_forward.1} parent=5 // pred_check_branch
      %141 = sbr.rel (%p138) target = $region32
    $region31: #{logistic_regression_forward.1} parent=5 // pred_region
      %s142 = ssub.s32 %s10, 1
      %p143 = scmp.lt.s32.totalorder %s15, 1
      %s144 = scalar_select %p143, %s15, 1
      %s145 = smul.addr %s144, 8
      %s146 = scalar_lea.vmem %s0, %s145
      %p147 = pneg %p36
      %p148 = pneg %p33
      %p149 = pneg %p57
      %p150 = pneg %p54
      %p151 = pneg %p78
      %p152 = pneg %p75
      %p153 = pneg %p104
      %p154 = pneg %p101
      %p155 = scmp.lt.s32.totalorder %s15, 1
      %s156 = scalar_select %p155, %s15, 1
      %s157 = smul.addr %s156, 8
      %s158 = scalar_lea.vmem %s3, %s157
      %p159 = scmp.lt.s32.totalorder %s15, 1
      %s160 = scalar_select %p159, %s15, 1
      %s161 = smul.addr %s160, 8
      %s162 = scalar_lea.vmem %s0, %s161
      %p163 = scmp.lt.s32.totalorder %s15, 1
      %s164 = scalar_select %p163, %s15, 1
      %s165 = smul.addr %s164, 8
      %s166 = scalar_lea.vmem %s3, %s165
      %v167 = vld [vmem:[%s162] sm:$0xff]
      %v168 = vld [vmem:[%s1] sm:$0x1]
      %v170 = vlaneseq
      %v171 = vshrl.u32 %v170, 7
      %v172 = vsub.s32 0, %v171
      %v173 = vrot.slane %v168, %v172
      %v175 = vmul.f32 %v167, %v173
      %vm176 = vcmask 261120
      %v177 = vsel %vm176, %v175, 0.0
      %178 = vadd.xlane.f32.xlu0 %v177
      %v179 = vpop.xlane.xlu0 %178
      %181 = vrot.lane.b32.xlu0 %v175, 96
      %v182 = vpop.permute.xlu0 %181
      %v184 = vsel %vm176, %v182, 0.0
      %185 = vadd.xlane.f32.xlu0 %v184
      %v186 = vpop.xlane.xlu0 %185
      %187 = vrot.lane.b32.xlu0 %v175, 64
      %v188 = vpop.permute.xlu0 %187
      %v190 = vsel %vm176, %v188, 0.0
      %191 = vadd.xlane.f32.xlu0 %v190
      %v192 = vpop.xlane.xlu0 %191
      %193 = vrot.lane.b32.xlu0 %v175, 32
      %v194 = vpop.permute.xlu0 %193
      %v196 = vsel %vm176, %v194, 0.0
      %197 = vadd.xlane.f32.xlu0 %v196
      %v198 = vpop.xlane.xlu0 %197
      %vm199 = vcmask 7168
      %v200 = vsel %vm199, %v179, %v186
      %vm201 = vcmask 15360
      %v202 = vsel %vm201, %v200, %v192
      %vm203 = vcmask 23552
      %v204 = vsel %vm203, %v202, %v198
      %s205 = sld [smem:[#allocation2]]
      %v206 = vstv %s205
      %v207 = vadd.f32 %v204, %v206
      %v208 = vxor.u32 %v207, 2147483648
      %v209 = vmul.f32 %v208, 1.442695
      %v210 = vpow.pop %v209
      %v211 = vadd.f32 %v210, 1.0
      %v212 = vrcp.pop %v211
      %v213 = vmul.f32 1.0, %v212
      %vm214 = vcmask 31744
      %215 = vst.msk [vmem:[%s166] sm:$0xff] %vm214, %v213
      %p216 = scmp.lt.s32.totalorder %s15, 1
      %s217 = scalar_select %p216, %s15, 1
      %s218 = smul.addr %s217, 8
      %s219 = scalar_lea.vmem %s3, %s218
      // Predicated region
      $region33: #{logistic_regression_forward.1} parent=31 // pred_check
        %p220 = pneg %p101
      $region34: #{logistic_regression_forward.1} parent=31 // pred_check_branch
        %222 = sbr.rel (%p220) target = $region36
      $region35: #{logistic_regression_forward.1} parent=31 // pred_region
        _
      $region36: #{logistic_regression_forward.1} parent=31 // pred_fallthru
        _
    $region32: #{logistic_regression_forward.1} parent=5 // pred_fallthru
      _
    %p223 = scmp.le.s32.totalorder 2, %s10
    // Predicated region
    $region37: #{logistic_regression_forward.1} parent=5 // pred_check
      %p224 = pneg %p223
    $region38: #{logistic_regression_forward.1} parent=5 // pred_check_branch
      %226 = sbr.rel (%p224) target = $region40
    $region39: #{logistic_regression_forward.1} parent=5 // pred_region
      %s227 = ssub.s32 %s10, 2
      // Predicated region
      $region41: #{logistic_regression_forward.1} parent=39 // pred_check
        %p228 = pneg %p107
      $region42: #{logistic_regression_forward.1} parent=39 // pred_check_branch
        %230 = sbr.rel (%p228) target = $region44
      $region43: #{logistic_regression_forward.1} parent=39 // pred_region
        %p231 = scmp.lt.s32.totalorder %s16, 1
        %s232 = scalar_select %p231, %s16, 1
        %s233 = smul.addr %s232, 8
        %s234 = scalar_lea.vmem %s3, %s233
      $region44: #{logistic_regression_forward.1} parent=39 // pred_fallthru
        _
    $region40: #{logistic_regression_forward.1} parent=5 // pred_fallthru
      _
  $region6: #{logistic_regression_forward.1} parent=0 // loop_footer
    %s14 = sadd.s32 1, %s10
  $region7: #{logistic_regression_forward.1} parent=0 // loop_footer_branch
    %9 = sbr.rel target = $region3
  $region8: #{logistic_regression_forward.1} parent=0 // loop_exit
    _

</llo_original>
